<compile_context>
chip_gen: v6e
topology: v6e:2x2x1
jax: 0.10.0
libtpu: 0.0.40
codegen_flags: <defaults>
</compile_context>

<pallas_src>
import jax
import jax.numpy as jnp
from jax.experimental import pallas as pl
from jax.experimental.pallas import tpu as pltpu


def _round_up(x, m):
    return ((x + m - 1) // m) * m


def _bce_sum_kernel(pred_ref, label_ref, mask_ref, weight_ref, out_ref, acc_ref):
    # grid = (G parallel row-groups, n_inner reduction chunks)
    j = pl.program_id(1)

    @pl.when(j == 0)
    def _():
        acc_ref[...] = jnp.zeros_like(acc_ref)

    x = pred_ref[...]        # (C, LT) logits, lane-dense
    y = label_ref[...]       # (C, LT) binary targets (0 in padded tail)
    m = mask_ref[...]        # (1, LT) row mask (have_label, 0/1 float)

    # numerically-stable BCE-with-logits, matches torch.nn.BCEWithLogitsLoss:
    #   max(x,0) - x*y + log(1 + exp(-|x|))
    bce = jnp.maximum(x, 0.0) - x * y + jnp.log1p(jnp.exp(-jnp.abs(x)))
    # elementwise accumulate; mask broadcast (1,LT)->(C,LT) is the only extra
    # VALU op per element (per-class weight deferred to the epilogue)
    acc_ref[...] = acc_ref[...] + bce * m

    @pl.when(j == pl.num_programs(1) - 1)
    def _():
        # per-class weight applied once, then a single cross-lane reduction
        # per group in the epilogue
        out_ref[...] = jnp.sum(acc_ref[...] * weight_ref[...]).reshape(1, 1)


def per_level_bce_loss(pred, label, have_label, weight, *,
                       lane_tile=65536, num_parallel=2):
    B, L, C = pred.shape
    N = B * L

    # Tile sizing: a big multiple of 128 lanes; tiny inputs become one block.
    lt = min(lane_tile, _round_up(N, 128))
    n_chunk = -(-N // lt)
    G = num_parallel if n_chunk >= num_parallel else 1
    n_inner = -(-n_chunk // G)
    n_pad = G * n_inner * lt

    # Lane-dense layout: classes on sublanes, rows on the 128-wide lane axis.
    p = pred.reshape(N, C).astype(jnp.float32).T        # (C, N)
    y = label.reshape(N, C).astype(jnp.float32).T       # (C, N)
    m = have_label.reshape(1, N).astype(jnp.float32)    # (1, N)
    pad = n_pad - N
    if pad:
        # zero-pad only the lane tail (zeros are benign values; mask=0
        # removes their contribution)
        p = jnp.pad(p, ((0, 0), (0, pad)))
        y = jnp.pad(y, ((0, 0), (0, pad)))
        m = jnp.pad(m, ((0, 0), (0, pad)))
    w = weight.reshape(C, 1).astype(jnp.float32)

    num = pl.pallas_call(
        _bce_sum_kernel,
        out_shape=jax.ShapeDtypeStruct((G, 1, 1), jnp.float32),
        grid_spec=pltpu.PrefetchScalarGridSpec(
            num_scalar_prefetch=0,
            grid=(G, n_inner),
            in_specs=[
                pl.BlockSpec((C, lt), lambda g, j: (0, g * n_inner + j)),  # pred
                pl.BlockSpec((C, lt), lambda g, j: (0, g * n_inner + j)),  # label
                pl.BlockSpec((1, lt), lambda g, j: (0, g * n_inner + j)),  # mask
                pl.BlockSpec((C, 1), lambda g, j: (0, 0)),                 # weight
            ],
            out_specs=pl.BlockSpec((None, 1, 1), lambda g, j: (g, 0, 0)),
            scratch_shapes=[pltpu.VMEM((C, lt), jnp.float32)],  # vector accumulator
        ),
        compiler_params=pltpu.CompilerParams(
            dimension_semantics=("parallel", "arbitrary")),
    )(p, y, m, w)

    # Denominator in plain XLA: (#selected rows) * (#classes).
    den = jnp.sum(have_label.astype(jnp.float32)) * jnp.float32(C)
    return jnp.sum(num) / den


def _reference(pred, label, have_label, weight):
    mask = have_label.astype(jnp.float32)[..., None]
    x = pred.astype(jnp.float32)
    y = label.astype(jnp.float32)
    bce = jnp.maximum(x, 0.0) - x * y + jnp.log1p(jnp.exp(-jnp.abs(x)))
    num = jnp.sum(bce * weight.reshape(1, 1, -1) * mask)
    den = jnp.sum(mask) * pred.shape[-1]
    return num / den


if __name__ == "__main__":
    key = jax.random.PRNGKey(0)

    # --- main test: batch of 2 samples, 8 "levels" per sample, 3 classes
    # (matches the per-class weight tensor [1.0, 2.0, 4.0] in __init__). ---
    k1, k2, k3 = jax.random.split(key, 3)
    B, L, C = 2, 8, 3
    pred = jax.random.normal(k1, (B, L, C), jnp.float32)
    label = (jax.random.uniform(k2, (B, L, C)) > 0.5).astype(jnp.float32)
    have_label = jax.random.uniform(k3, (B, L)) > 0.3
    weight = jnp.array([1.0, 2.0, 4.0], jnp.float32)

    loss = per_level_bce_loss(pred, label, have_label, weight)
    jax.block_until_ready(loss)
    ref = _reference(pred, label, have_label, weight)
    assert jnp.allclose(loss, ref, rtol=1e-5, atol=1e-6), (float(loss), float(ref))

    # --- secondary test: non-multiple-of-128 row count, multiple lane chunks
    # and both parallel groups exercised (small lane_tile override). ---
    k4, k5, k6 = jax.random.split(jax.random.PRNGKey(1), 3)
    B2, L2 = 3, 500
    pred2 = jax.random.normal(k4, (B2, L2, C), jnp.float32)
    label2 = (jax.random.uniform(k5, (B2, L2, C)) > 0.5).astype(jnp.float32)
    have2 = jax.random.uniform(k6, (B2, L2)) > 0.5
    loss2 = per_level_bce_loss(pred2, label2, have2, weight, lane_tile=256)
    jax.block_until_ready(loss2)
    ref2 = _reference(pred2, label2, have2, weight)
    assert jnp.allclose(loss2, ref2, rtol=1e-5, atol=1e-6), (float(loss2), float(ref2))

    print("KERNEL_OK")
</pallas_src>

<mosaic_0001>
module attributes {stable_mosaic.version = 11 : i64} {
  func.func @_bce_sum_kernel(%arg0: i32, %arg1: i32, %arg2: memref<3x128xf32, #tpu.memory_space<vmem>>, %arg3: memref<3x128xf32, #tpu.memory_space<vmem>>, %arg4: memref<1x128xf32, #tpu.memory_space<vmem>>, %arg5: memref<3x1xf32, #tpu.memory_space<vmem>>, %arg6: memref<1x1x1xf32, #tpu.memory_space<vmem>>, %arg7: memref<3x128xf32, #tpu.memory_space<vmem>>) attributes {dimension_semantics = [#tpu.dimension_semantics<parallel>, #tpu.dimension_semantics<arbitrary>], iteration_bounds = array<i64: 1, 1>, scalar_prefetch = 0 : i64, scratch_operands = 1 : i64, tpu.core_type = #tpu.core_type<tc>, window_params = [{transform_indices = @transform_0, window_bounds = array<i64: 3, 128>}, {transform_indices = @transform_1, window_bounds = array<i64: 3, 128>}, {transform_indices = @transform_2, window_bounds = array<i64: 1, 128>}, {pipeline_mode = #tpu.pipeline_mode<synchronous>, transform_indices = @transform_3, window_bounds = array<i64: 3, 1>}, {transform_indices = @transform_4, window_bounds = array<i64: 1, 1, 1>}]} {
    %c0_i32 = arith.constant 0 : i32
    %0 = arith.cmpi eq, %arg1, %c0_i32 : i32
    %1 = arith.extui %0 : i1 to i32
    %c0_i32_0 = arith.constant 0 : i32
    %2 = arith.cmpi ne, %1, %c0_i32_0 : i32
    scf.if %2 {
      %cst_13 = arith.constant 0.000000e+00 : f32
      %24 = vector.broadcast %cst_13 : f32 to vector<3x128xf32>
      %c0_14 = arith.constant 0 : index
      %c0_15 = arith.constant 0 : index
      %25 = vector.load %arg7[%c0_14, %c0_15] : memref<3x128xf32, #tpu.memory_space<vmem>>, vector<3x128xf32>
      tpu.vector_store %arg7[%c0_14, %c0_15], %24 {strides = array<i32>} : memref<3x128xf32, #tpu.memory_space<vmem>>, vector<3x128xf32>,
    } else {
    }
    %c0 = arith.constant 0 : index
    %c0_1 = arith.constant 0 : index
    %3 = vector.load %arg2[%c0, %c0_1] : memref<3x128xf32, #tpu.memory_space<vmem>>, vector<3x128xf32>
    %c0_2 = arith.constant 0 : index
    %c0_3 = arith.constant 0 : index
    %4 = vector.load %arg3[%c0_2, %c0_3] : memref<3x128xf32, #tpu.memory_space<vmem>>, vector<3x128xf32>
    %c0_4 = arith.constant 0 : index
    %c0_5 = arith.constant 0 : index
    %5 = vector.load %arg4[%c0_4, %c0_5] : memref<1x128xf32, #tpu.memory_space<vmem>>, vector<1x128xf32>
    %cst = arith.constant 0.000000e+00 : f32
    %6 = vector.broadcast %cst : f32 to vector<3x128xf32>
    %7 = arith.maximumf %3, %6 : vector<3x128xf32>
    %8 = arith.mulf %3, %4 : vector<3x128xf32>
    %9 = arith.subf %7, %8 : vector<3x128xf32>
    %10 = math.absf %3 : vector<3x128xf32>
    %cst_6 = arith.constant 0.000000e+00 : f32
    %11 = vector.broadcast %cst_6 : f32 to vector<3x128xf32>
    %12 = arith.subf %11, %10 : vector<3x128xf32>
    %13 = math.exp %12 : vector<3x128xf32>
    %14 = math.log1p %13 : vector<3x128xf32>
    %15 = arith.addf %9, %14 : vector<3x128xf32>
    %c0_7 = arith.constant 0 : index
    %c0_8 = arith.constant 0 : index
    %16 = vector.load %arg7[%c0_7, %c0_8] : memref<3x128xf32, #tpu.memory_space<vmem>>, vector<3x128xf32>
    %17 = vector.broadcast %5 : vector<1x128xf32> to vector<3x128xf32>
    %18 = arith.mulf %15, %17 : vector<3x128xf32>
    %19 = arith.addf %16, %18 : vector<3x128xf32>
    %c0_9 = arith.constant 0 : index
    %c0_10 = arith.constant 0 : index
    %20 = vector.load %arg7[%c0_9, %c0_10] : memref<3x128xf32, #tpu.memory_space<vmem>>, vector<3x128xf32>
    tpu.vector_store %arg7[%c0_9, %c0_10], %19 {strides = array<i32>} : memref<3x128xf32, #tpu.memory_space<vmem>>, vector<3x128xf32>,
    %c0_i32_11 = arith.constant 0 : i32
    %21 = arith.cmpi eq, %arg1, %c0_i32_11 : i32
    %22 = arith.extui %21 : i1 to i32
    %c0_i32_12 = arith.constant 0 : i32
    %23 = arith.cmpi ne, %22, %c0_i32_12 : i32
    scf.if %23 {
      %c0_13 = arith.constant 0 : index
      %c0_14 = arith.constant 0 : index
      %24 = vector.load %arg7[%c0_13, %c0_14] : memref<3x128xf32, #tpu.memory_space<vmem>>, vector<3x128xf32>
      %c0_15 = arith.constant 0 : index
      %c0_16 = arith.constant 0 : index
      %25 = vector.load %arg5[%c0_15, %c0_16] : memref<3x1xf32, #tpu.memory_space<vmem>>, vector<3x1xf32>
      %26 = vector.broadcast %25 : vector<3x1xf32> to vector<3x128xf32>
      %27 = arith.mulf %24, %26 : vector<3x128xf32>
      %28 = vector.shape_cast %27 : vector<3x128xf32> to vector<1x3x128xf32>
      %cst_17 = arith.constant dense<0.000000e+00> : vector<1xf32>
      %29 = vector.multi_reduction <add>, %28, %cst_17 [1, 2] : vector<1x3x128xf32> to vector<1xf32>
      %30 = vector.shape_cast %29 : vector<1xf32> to vector<1x1x1xf32>
      %31 = vector.extract %30[0, 0, 0] : f32 from vector<1x1x1xf32>
      %32 = vector.broadcast %31 : f32 to vector<1x1xf32>
      %c0_18 = arith.constant 0 : index
      %c0_19 = arith.constant 0 : index
      %c0_20 = arith.constant 0 : index
      %33 = vector.load %arg6[%c0_18, %c0_19, %c0_20] : memref<1x1x1xf32, #tpu.memory_space<vmem>>, vector<1x1x1xf32>
      %34 = vector.shape_cast %33 : vector<1x1x1xf32> to vector<1x1xf32>
      %35 = vector.shape_cast %32 : vector<1x1xf32> to vector<1x1x1xf32>
      tpu.vector_store %arg6[%c0_18, %c0_19, %c0_20], %35 {strides = array<i32>} : memref<1x1x1xf32, #tpu.memory_space<vmem>>, vector<1x1x1xf32>,
    } else {
    }
    return
  }
  func.func @transform_0(%arg0: i32, %arg1: i32) -> (i32, i32) {
    %c1_i32 = arith.constant 1 : i32
    %0 = arith.muli %arg0, %c1_i32 : i32
    %1 = arith.addi %0, %arg1 : i32
    %c0_i32 = arith.constant 0 : i32
    %c0_i32_0 = arith.constant 0 : i32
    return %c0_i32, %1 : i32, i32
  }
  func.func @transform_1(%arg0: i32, %arg1: i32) -> (i32, i32) {
    %c1_i32 = arith.constant 1 : i32
    %0 = arith.muli %arg0, %c1_i32 : i32
    %1 = arith.addi %0, %arg1 : i32
    %c0_i32 = arith.constant 0 : i32
    %c0_i32_0 = arith.constant 0 : i32
    return %c0_i32, %1 : i32, i32
  }
  func.func @transform_2(%arg0: i32, %arg1: i32) -> (i32, i32) {
    %c1_i32 = arith.constant 1 : i32
    %0 = arith.muli %arg0, %c1_i32 : i32
    %1 = arith.addi %0, %arg1 : i32
    %c0_i32 = arith.constant 0 : i32
    %c0_i32_0 = arith.constant 0 : i32
    return %c0_i32, %1 : i32, i32
  }
  func.func @transform_3(%arg0: i32, %arg1: i32) -> (i32, i32) {
    %c0_i32 = arith.constant 0 : i32
    %c0_i32_0 = arith.constant 0 : i32
    %c0_i32_1 = arith.constant 0 : i32
    return %c0_i32, %c0_i32_0 : i32, i32
  }
  func.func @transform_4(%arg0: i32, %arg1: i32) -> (i32, i32, i32) {
    %c0_i32 = arith.constant 0 : i32
    %c0_i32_0 = arith.constant 0 : i32
    %c0_i32_1 = arith.constant 0 : i32
    return %arg0, %c0_i32, %c0_i32_0 : i32, i32, i32
  }
}

</mosaic_0001>

<llo_original>
// kernel: tpu_custom_call.1
$region0: #{tpu_custom_call.1}
  #allocation0 [shape = 'u32[]', space=smem, size = 0x4, offset = 0x4, fixed_abs, tag = 'smem constant byte address 0x4 - core index']
  #allocation1 [shape = 'u32[144,128]{1,0:T(1,128)}', space=vmem, size = 0x12000, scoped, tag = 'internal scratch']
  #allocation2 [shape = 'f32[3,128]{1,0:T(4,128)}', space=vmem, size = 0x800, scoped, tag = 'scratch operand']
  %s0 = inlined_call_operand.vmem [shape: f32[3,128], index: 0, kind: input, shape index: {}]
  %s1 = inlined_call_operand.hbm [shape: f32[3,128], index: 1, kind: input, shape index: {}]
  %s2 = inlined_call_operand.vmem [shape: f32[1,128], index: 2, kind: input, shape index: {}]
  %s3 = inlined_call_operand.vmem [shape: f32[3,1], index: 3, kind: input, shape index: {}]
  %s4 = inlined_call_operand.hbm [shape: f32[1,1,1], index: 4, kind: output, shape index: {}]
  %s5 = sld [smem:[#allocation0]]
  $region38: #{tpu_custom_call.1} parent=0
    _
  %s7 = ssub.s32 1, %s5
  %s8 = scalar_select 0, %s7, %s5
  $region1: #{tpu_custom_call.1} parent=0
    #allocation3 [shape = 'u8[2048]{0}', space=vmem, size = 0x800, scoped, tag = 'input window, operand 1, single buffered']
    #allocation4 [shape = 's32[1]{0}', space=sflag, size = 0x4, scoped, tag = 'scoped memory for tpu_custom_call.1']
    #allocation5 [shape = 's32[1]{0}', space=sflag, size = 0x4, scoped, tag = 'scoped memory for tpu_custom_call.1']
    #allocation6 [shape = 'u8[512]{0}', space=vmem, size = 0x400, scoped, tag = 'output window, operand 0, single buffered']
    %9 = vsyncpa [#allocation4], 0
    %10 = vsyncpa [#allocation5], 0
    // Predicated region
    $region2: #{tpu_custom_call.1} parent=1 // pred_check
      _
    $region3: #{tpu_custom_call.1} parent=1 // pred_check_branch
      %12 = sbr.rel (0) target = $region5
    $region4: #{tpu_custom_call.1} parent=1 // pred_region
      %s13 = sadd.s32 0, 0
      %p14 = scmp.lt.s32.totalorder %s13, 0
      %s15 = scalar_select %p14, %s13, 0
      %s16 = smul.addr %s15, 4
      %s17 = scalar_lea.vmem %s0, %s16
      %s18 = sadd.s32 0, 0
    $region5: #{tpu_custom_call.1} parent=1 // pred_fallthru
      _
    // Predicated region
    $region6: #{tpu_custom_call.1} parent=1 // pred_check
      _
    $region7: #{tpu_custom_call.1} parent=1 // pred_check_branch
      %20 = sbr.rel (0) target = $region9
    $region8: #{tpu_custom_call.1} parent=1 // pred_region
      %s21 = sadd.s32 0, 0
      %s23 = ssub.s32 64, 64
      %24 = vsyncadd [#allocation4], %s23
      %s25 = smul.addr %s21, 64
      %s26 = scalar_lea.hbm %s1, %s25
      %s28 = sshll.u32 [#allocation3], 4
      %s29 = int_to_ptr.vmem [resolvable:$true] %s28
      %31 = dma.hbm_to_vmem [thread:$0]  %s26, 64, %s29, [#allocation4]
    $region9: #{tpu_custom_call.1} parent=1 // pred_fallthru
      _
    // Predicated region
    $region10: #{tpu_custom_call.1} parent=1 // pred_check
      _
    $region11: #{tpu_custom_call.1} parent=1 // pred_check_branch
      %33 = sbr.rel (0) target = $region13
    $region12: #{tpu_custom_call.1} parent=1 // pred_region
      %s34 = sadd.s32 0, 0
      %p35 = scmp.lt.s32.totalorder %s34, 0
      %s36 = scalar_select %p35, %s34, 0
      %s37 = scalar_lea.vmem %s2, %s36
      %s38 = sadd.s32 0, 0
    $region13: #{tpu_custom_call.1} parent=1 // pred_fallthru
      _
    // Predicated region
    $region14: #{tpu_custom_call.1} parent=1 // pred_check
      _
    $region15: #{tpu_custom_call.1} parent=1 // pred_check_branch
      %40 = sbr.rel (0) target = $region17
    $region16: #{tpu_custom_call.1} parent=1 // pred_region
      _
    $region17: #{tpu_custom_call.1} parent=1 // pred_fallthru
      _
    // Predicated region
    $region18: #{tpu_custom_call.1} parent=1 // pred_check
      _
    $region19: #{tpu_custom_call.1} parent=1 // pred_check_branch
      %42 = sbr.rel (0) target = $region21
    $region20: #{tpu_custom_call.1} parent=1 // pred_region
      %43 = dma.done [#allocation4], 64
    $region21: #{tpu_custom_call.1} parent=1 // pred_fallthru
      _
    %s44 = sadd.s32 0, 0
    %p45 = scmp.lt.s32.totalorder %s44, 0
    %s46 = scalar_select %p45, %s44, 0
    %s47 = smul.addr %s46, 4
    %s48 = scalar_lea.vmem %s0, %s47
    %s49 = sadd.s32 0, 0
    %p50 = scmp.lt.s32.totalorder %s49, 0
    %s51 = scalar_select %p50, %s49, 0
    %s52 = scalar_lea.vmem %s2, %s51
    %s53 = sadd.s32 0, 0
    %p54 = scmp.lt.s32.totalorder %s53, 0
    %s55 = scalar_select %p54, %s53, 0
    %s56 = smul.addr %s55, 4
    %s57 = scalar_lea.vmem %s0, %s56
    %s58 = sadd.s32 0, 0
    %s59 = sadd.s32 0, 0
    %s60 = sadd.s32 0, 0
    %p61 = scmp.lt.s32.totalorder %s60, 0
    %s62 = scalar_select %p61, %s60, 0
    %s63 = scalar_lea.vmem %s2, %s62
    %s64 = sadd.s32 0, 0
    %p65 = scmp.eq.s32.totalorder 0, 0
    // Predicated region
    $region22: #{tpu_custom_call.1} parent=1 // pred_check
      %p66 = pneg %p65
    $region23: #{tpu_custom_call.1} parent=1 // pred_check_branch
      %68 = sbr.rel (%p66) target = $region25
    $region24: #{tpu_custom_call.1} parent=1 // pred_region
      %69 = vst [vmem:[#allocation2] sm:$0x7] 0.0
    $region25: #{tpu_custom_call.1} parent=1 // pred_fallthru
      _
    %v70 = vld [vmem:[%s57] sm:$0x7]
    %v71 = vld [vmem:[#allocation3] sm:$0x7]
    %v72 = vld [vmem:[%s63] sm:$0x1]
    %v73 = vmax.f32 %v70, 0.0
    %v74 = vmul.f32 %v70, %v71
    %v75 = vsub.f32 %v73, %v74
    %v76 = vand.u32 2147483647, %v70
    %v77 = vsub.f32 0.0, %v76
    %v78 = vmul.f32 %v77, 1.442695
    %v79 = vpow.pop %v78
    %v80 = vadd.f32 %v79, 1.0
    %v81 = vlog2.pop %v80
    %v82 = vmul.f32 %v81, 0.6931472
    %v83 = vmul.f32 -0.5, %v79
    %v84 = vadd.f32 %v83, 1.0
    %v85 = vmul.f32 %v84, %v79
    %v86 = vand.u32 2147483647, %v79
    %vm87 = vcmp.lt.f32.partialorder %v86, 0.0004427343
    %v88 = vsel %vm87, %v85, %v82
    %v89 = vadd.f32 %v75, %v88
    %v90 = vld [vmem:[#allocation2] sm:$0x7]
    %v92 = vlaneseq
    %v93 = vshrl.u32 %v92, 7
    %v94 = vsub.s32 0, %v93
    %v95 = vrot.slane %v72, %v94
    %v97 = vmul.f32 %v89, %v95
    %v98 = vadd.f32 %v90, %v97
    %99 = vst [vmem:[#allocation2] sm:$0x7] %v98
    // Predicated region
    $region26: #{tpu_custom_call.1} parent=1 // pred_check
      %p100 = pneg %p65
    $region27: #{tpu_custom_call.1} parent=1 // pred_check_branch
      %102 = sbr.rel (%p100) target = $region29
    $region28: #{tpu_custom_call.1} parent=1 // pred_region
      %v103 = vld [vmem:[#allocation2] sm:$0x7]
      %v104 = vld [vmem:[%s3] sm:$0x7]
      %106 = vset.pattern.permute.xlu0 0
      %107 = vperm.xlu0 %106, %v104
      %v108 = vpop.permute.xlu0 %107
      %v110 = vmul.f32 %v103, %v108
      %vm111 = vcmask 1042432
      %v112 = vsel %vm111, %v110, 0.0
      %113 = vadd.xlane.f32.xlu0 %v112
      %v114 = vpop.xlane.xlu0 %113
      %v115 = vrot.slane %v114, 4
      %v116 = vadd.f32 %v114, %v115
      %v117 = vrot.slane %v116, 2
      %v118 = vadd.f32 %v116, %v117
      %v119 = vrot.slane %v118, 1
      %v120 = vadd.f32 %v118, %v119
      %s121 = vtos %v120
      %v122 = vstv %s121
      %vm123 = vcmask 0
      %124 = vst.msk [vmem:[#allocation6] sm:$0x1] %vm123, %v122
    $region29: #{tpu_custom_call.1} parent=1 // pred_fallthru
      _
    // Predicated region
    $region30: #{tpu_custom_call.1} parent=1 // pred_check
      _
    $region31: #{tpu_custom_call.1} parent=1 // pred_check_branch
      %126 = sbr.rel (0) target = $region33
    $region32: #{tpu_custom_call.1} parent=1 // pred_region
      %s128 = ssub.s32 16, 16
      %129 = vsyncadd [#allocation5], %s128
      %s131 = sshll.u32 [#allocation6], 4
      %s132 = int_to_ptr.vmem [resolvable:$true] %s131
      %134 = dma.vmem_to_hbm [thread:$0]  %s132, 16, %s4, [#allocation5]
    $region33: #{tpu_custom_call.1} parent=1 // pred_fallthru
      _
    // Predicated region
    $region34: #{tpu_custom_call.1} parent=1 // pred_check
      _
    $region35: #{tpu_custom_call.1} parent=1 // pred_check_branch
      %136 = sbr.rel (0) target = $region37
    $region36: #{tpu_custom_call.1} parent=1 // pred_region
      %137 = dma.done [#allocation5], 16
    $region37: #{tpu_custom_call.1} parent=1 // pred_fallthru
      _
    %138 = vsyncpa [#allocation4], 1
    %139 = vsyncpa [#allocation5], 1

</llo_original>
